<compile_context>
chip_gen: v7x
topology: tpu7x:2x2x1
jax: 0.10.0
libtpu: 0.0.40
codegen_flags: <defaults>
</compile_context>

<pallas_src>
import functools

import numpy as np
import jax
import jax.numpy as jnp
from jax import lax
from jax.experimental import pallas as pl
from jax.experimental.pallas import tpu as pltpu

# ----------------------------- configuration -----------------------------
NTYPE = 3          # number of element types
NWAVE = 8          # number of radial gaussians (rs.shape[1])
NORBIT = 32        # orbital channels
NIPSIN = 2         # angular order -> norb_ang = 1 + 3 = 4
CUTOFF = 5.0
NEIGH_ATOMS = 16
NBATCH = 2
NUMATOM = 8
NNEIGH = 32        # neighbour-pair slots per configuration (incl. padding)
DTYPE = jnp.float32

MAX_PBLK = 2048    # pair tile upper bound (lane axis), multiple of 128
MAX_ABLK = 512     # atom tile upper bound for the density matmul, multiple of 8

NPARA = tuple(3 ** i for i in range(NIPSIN))       # channels per angular level (1, 3)
NORB_ANG = sum(NPARA)                              # 4 for nipsin=2
INDEX_PARA = np.concatenate(
    [np.full(3 ** i, i, dtype=np.int32) for i in range(NIPSIN)])   # [0,1,1,1]


def _round_up(x, m):
    return ((x + m - 1) // m) * m


# ----------------------------- shared helper -----------------------------
def angular_channels(fcut, dvec, nipsin):
    """fcut: (N,1), dvec: (N,3) -> list of (N,1) columns (PyTorch `angular` order)."""
    channels = [fcut]
    prev = [fcut]
    for _ in range(1, nipsin):
        new = [c * dvec[:, k:k + 1] for c in prev for k in range(3)]
        channels.extend(new)
        prev = new
    return channels


# --------------------- Pallas kernel 1: pairwise orbital ------------------
def _pair_kernel(ci_ref, cj_ref, sh_ref, rs_ref, inta_ref, co_ref, out_ref, *,
                 nipsin, cutoff):
    # pair-on-lanes layout: blocks are (feat, PBLK); feat sits on sublanes.
    dvec = cj_ref[...] - ci_ref[...] + sh_ref[...]                   # (3, P)
    dx = dvec[0:1, :]
    dy = dvec[1:2, :]
    dz = dvec[2:3, :]
    d2 = dx * dx + dy * dy + dz * dz                                 # (1, P)
    d2 = jnp.maximum(d2, 1e-12)                                      # guard padded/degenerate pairs
    inv = lax.rsqrt(d2)                                              # EUP rsqrt, no divide
    dist = d2 * inv                                                  # == sqrt(d2)
    ux, uy, uz = dx * inv, dy * inv, dz * inv                        # unit direction
    # cutoff_cos
    fcut = jnp.square(0.5 * jnp.cos(dist * (np.pi / cutoff)) + 0.5)  # (1, P)
    # gaussian (exact PyTorch expression: exp(inta * (d - rs)^2))
    radial = jnp.exp(inta_ref[...] * jnp.square(dist - rs_ref[...])) # (nwave, P)
    rc = radial * co_ref[...]                                        # orb_coeff*valid folded in
    # angular channels (PyTorch ordering) * radial * orb_coeff  ==  worbital
    channels = [fcut]
    prev = [fcut]
    for _ in range(1, nipsin):
        new = [c * u for c in prev for u in (ux, uy, uz)]
        channels.extend(new)
        prev = new
    for j, a in enumerate(channels):                                 # norb_ang stores, lane-dense
        out_ref[j, :, :] = (a * rc).astype(out_ref.dtype)


def pairwise_worbital(ci_t, cj_t, sh_t, rs_t, inta_t, co_t, nipsin, cutoff):
    """All inputs are (feat, npair). Returns worbital as (norb_ang, nwave, npair)."""
    nwave, npair = rs_t.shape
    norb_ang = sum(3 ** i for i in range(nipsin))
    blk = min(MAX_PBLK, _round_up(npair, 128))
    npad = _round_up(npair, blk)
    pad = npad - npair
    if pad:
        pad2 = ((0, 0), (0, pad))
        ci_t = jnp.pad(ci_t, pad2)
        cj_t = jnp.pad(cj_t, pad2)
        sh_t = jnp.pad(sh_t, pad2)
        rs_t = jnp.pad(rs_t, pad2)
        inta_t = jnp.pad(inta_t, pad2)
        co_t = jnp.pad(co_t, pad2)        # zero coeff -> padded tail contributes nothing
    kern = functools.partial(_pair_kernel, nipsin=nipsin, cutoff=cutoff)
    out = pl.pallas_call(
        kern,
        out_shape=jax.ShapeDtypeStruct((norb_ang, nwave, npad), ci_t.dtype),
        grid_spec=pltpu.PrefetchScalarGridSpec(
            num_scalar_prefetch=0,
            grid=(npad // blk,),
            in_specs=[
                pl.BlockSpec((3, blk), lambda p: (0, p)),            # cart_i^T
                pl.BlockSpec((3, blk), lambda p: (0, p)),            # cart_j^T
                pl.BlockSpec((3, blk), lambda p: (0, p)),            # shift^T
                pl.BlockSpec((nwave, blk), lambda p: (0, p)),        # rs[species_j]^T
                pl.BlockSpec((nwave, blk), lambda p: (0, p)),        # inta[species_j]^T
                pl.BlockSpec((nwave, blk), lambda p: (0, p)),        # (orb_coeff*valid)^T
            ],
            out_specs=pl.BlockSpec((norb_ang, nwave, blk), lambda p: (0, 0, p)),
        ),
        compiler_params=pltpu.CompilerParams(dimension_semantics=("parallel",)),
    )(ci_t, cj_t, sh_t, rs_t, inta_t, co_t)
    return out[:, :, :npair]


# --------------- Pallas kernel 2: density = sum_j (efo_j @ hyper_lvl(j))^2 -
def _density_kernel(efo_ref, hyper_ref, out_ref, *, npara):
    ablk, norbit = out_ref.shape
    nwave = efo_ref.shape[2]
    acc = jnp.zeros((ablk, norbit), jnp.float32)
    off = 0
    for lvl, nch in enumerate(npara):            # group channels per angular level
        efo = efo_ref[off:off + nch, :, :]                       # (nch, ablk, nwave)
        hw = jnp.dot(efo.reshape(nch * ablk, nwave), hyper_ref[lvl],
                     preferred_element_type=jnp.float32)         # one MXU dot per level
        hw = hw.reshape(nch, ablk, norbit)
        acc = acc + jnp.sum(hw * hw, axis=0)
        off += nch
    out_ref[...] = acc.astype(out_ref.dtype)


def density_from_ef_orbital(ef_orbital, hyper, npara):
    norb_ang, totnatom, nwave = ef_orbital.shape
    nipsin, _, norbit = hyper.shape
    ablk = min(MAX_ABLK, _round_up(totnatom, 8))
    apad = _round_up(totnatom, ablk)
    if apad != totnatom:
        ef_orbital = jnp.pad(ef_orbital, ((0, 0), (0, apad - totnatom), (0, 0)))
    kern = functools.partial(_density_kernel, npara=npara)
    out = pl.pallas_call(
        kern,
        out_shape=jax.ShapeDtypeStruct((apad, norbit), ef_orbital.dtype),
        grid_spec=pltpu.PrefetchScalarGridSpec(
            num_scalar_prefetch=0,
            grid=(apad // ablk,),
            in_specs=[
                pl.BlockSpec((norb_ang, ablk, nwave), lambda a: (0, a, 0)),
                pl.BlockSpec((nipsin, nwave, norbit), lambda a: (0, 0, 0)),
            ],
            out_specs=pl.BlockSpec((ablk, norbit), lambda a: (a, 0)),
        ),
        compiler_params=pltpu.CompilerParams(dimension_semantics=("parallel",)),
    )(ef_orbital, hyper)
    return out[:totnatom]


# ------------------------------- forward ----------------------------------
def get_density_forward(cart, ef, numatoms, species, atom_index, shifts, params):
    rs, inta, coeff_params, hyper, ef_para = (
        params[k] for k in ("rs", "inta", "params", "hyper", "ef_para"))
    nbatch, numatom, _ = cart.shape
    cart_ = cart.reshape(-1, 3)
    totnatom = cart_.shape[0]
    nwave = rs.shape[1]

    # ef_orbital: angular expansion of the field vector with f_cut = 1,
    # times ef_para, broadcast to every atom of its configuration.
    ef_ch = angular_channels(jnp.ones((nbatch, 1), cart.dtype), ef, NIPSIN)
    ef_ang = jnp.concatenate(ef_ch, axis=1)                      # (nbatch, norb_ang)
    ef_orb = ef_ang.T[:, :, None] * ef_para[None, None, :]       # (norb_ang, nbatch, nwave)
    ef_orbital = jnp.broadcast_to(
        ef_orb[:, :, None, :], (NORB_ANG, nbatch, numatom, nwave)
    ).reshape(NORB_ANG, totnatom, nwave)

    # neighbour-list flattening (same index math as the PyTorch forward);
    # padded pairs (shift = -1e11) are carried with a 0/1 mask folded into coeff.
    nneigh = atom_index.shape[2]
    self_mol_index = jnp.broadcast_to(
        (jnp.arange(nbatch) * numatom)[:, None], (nbatch, nneigh)).reshape(-1)
    atom_index12 = atom_index.reshape(2, -1) + self_mol_index[None, :]
    shifts_flat = shifts.reshape(-1, 3)
    valid = jnp.all(shifts_flat > -1e10, axis=-1)
    valid_row = valid.astype(cart.dtype)[None, :]                # (1, npair)

    # pair-on-lanes layout: every per-pair feature becomes (feat, npair)
    cart_t = cart_.T                                             # (3, totnatom)
    ci_t = cart_t[:, atom_index12[0]]
    cj_t = cart_t[:, atom_index12[1]]
    sh_t = shifts_flat.T
    species_j = jnp.maximum(species[atom_index12[1]], 0)         # clamp padded species (<0)
    rs_t = rs.T[:, species_j]
    inta_t = inta.T[:, species_j]
    # orb_coeff of neighbour j with the validity mask folded in: one less DMA
    # stream and padded pairs contribute exactly zero.
    co_t = coeff_params.T[:, species_j] * valid_row

    # Pallas kernel 1: per-pair hot path (dist, cutoff, gaussian, angular
    # expansion, orb_coeff weighting) -> worbital (norb_ang, nwave, npair)
    worbital_t = pairwise_worbital(ci_t, cj_t, sh_t, rs_t, inta_t, co_t,
                                   NIPSIN, CUTOFF)

    # torch.index_add: scatter-add pair contributions onto centre atoms.
    # TODO(synk): the data-dependent scatter stays in XLA; fusing it into the
    # density kernel needs a centre-sorted/segmented neighbour list fed via
    # PrefetchScalarGridSpec scalar prefetch.
    worbital = jnp.transpose(worbital_t, (0, 2, 1))              # (norb_ang, npair, nwave)
    ef_orbital = ef_orbital.at[:, atom_index12[0], :].add(worbital)

    # Pallas kernel 2: per-level fused matmul with hyper + square + sum over j
    density = density_from_ef_orbital(ef_orbital, hyper, NPARA)
    return density                                               # (totnatom, norbit)


# --------------------------- pure-JAX reference ----------------------------
def reference_density(cart, ef, numatoms, species, atom_index, shifts, params):
    rs, inta, coeff_params, hyper, ef_para = (
        params[k] for k in ("rs", "inta", "params", "hyper", "ef_para"))
    nbatch, numatom, _ = cart.shape
    cart_ = cart.reshape(-1, 3)
    totnatom = cart_.shape[0]

    ef_ch = angular_channels(jnp.ones((nbatch, 1), cart.dtype), ef, NIPSIN)
    ef_ang = jnp.concatenate(ef_ch, axis=1)
    ef_orbital = ef_ang[:, :, None] * ef_para[None, None, :]
    ef_orbital = jnp.broadcast_to(
        ef_orbital[:, None], (nbatch, numatom, NORB_ANG, NWAVE)
    ).reshape(totnatom, NORB_ANG, NWAVE)

    nneigh = atom_index.shape[2]
    self_mol_index = jnp.broadcast_to(
        (jnp.arange(nbatch) * numatom)[:, None], (nbatch, nneigh)).reshape(-1)
    atom_index12 = atom_index.reshape(2, -1) + self_mol_index[None, :]
    shifts_flat = shifts.reshape(-1, 3)
    valid = jnp.all(shifts_flat > -1e10, axis=-1)

    dvec = cart_[atom_index12[1]] - cart_[atom_index12[0]] + shifts_flat
    d2 = jnp.where(valid, jnp.sum(dvec * dvec, -1), 1.0)
    dist = jnp.sqrt(d2)
    dvec = dvec / dist[:, None]
    fcut = jnp.square(0.5 * jnp.cos(dist * (np.pi / CUTOFF)) + 0.5)
    species_j = species[atom_index12[1]]
    radial = jnp.exp(inta[species_j] * jnp.square(dist[:, None] - rs[species_j]))
    ang = jnp.concatenate(angular_channels(fcut[:, None], dvec, NIPSIN), axis=1)
    orb_coeff = coeff_params[species]
    coeff_p = orb_coeff[atom_index12[1]]
    w = ang[:, :, None] * (radial * coeff_p * valid[:, None].astype(cart.dtype))[:, None, :]
    ef_orbital = ef_orbital.at[atom_index12[0]].add(w)
    hyper_sel = hyper[INDEX_PARA]
    hw = jnp.einsum('ijk,jkm->ijm', ef_orbital, hyper_sel,
                    precision=jax.lax.Precision.HIGHEST)   # true-f32 ground truth
    return jnp.sum(hw * hw, axis=1)


# ------------------------------- params/inputs -----------------------------
def init_params(key):
    k1, k2, k3 = jax.random.split(key, 3)
    rs = jax.random.uniform(k1, (NTYPE, NWAVE), DTYPE, 0.0, CUTOFF)
    inta = -jax.random.uniform(k2, (NTYPE, NWAVE), DTYPE, 0.2, 1.0)
    coeff = jnp.ones((NTYPE, NWAVE), DTYPE) / float(NEIGH_ATOMS)       # self.params
    xavier_std = float(np.sqrt(2.0 / (NWAVE + NORBIT)))
    hyper0 = jax.random.normal(k3, (NWAVE, NORBIT), DTYPE) * xavier_std
    hyper = jnp.tile(hyper0[None], (NIPSIN, 1, 1))                     # .repeat(nipsin,1,1)
    ef_para = jnp.ones((NWAVE,), DTYPE)
    return dict(rs=rs, inta=inta, params=coeff, hyper=hyper, ef_para=ef_para)


def make_inputs(key):
    kc, ke = jax.random.split(key, 2)
    cart = jax.random.uniform(kc, (NBATCH, NUMATOM, 3), DTYPE, 0.0, 3.0)
    ef = jax.random.normal(ke, (NBATCH, 3), DTYPE)
    numatoms = jnp.full((NBATCH,), NUMATOM, jnp.int32)
    species = jnp.array(np.arange(NBATCH * NUMATOM) % NTYPE, jnp.int32)
    # neighbour list: atom i paired with (i+k) % NUMATOM for k = 1..4
    idx_i, idx_j = [], []
    for i in range(NUMATOM):
        for k in range(1, 5):
            idx_i.append(i)
            idx_j.append((i + k) % NUMATOM)
    ai = np.stack([np.array(idx_i), np.array(idx_j)])                  # (2, NNEIGH)
    atom_index = jnp.array(
        np.broadcast_to(ai[:, None, :], (2, NBATCH, NNEIGH)), jnp.int32)
    shifts_np = np.zeros((NBATCH, NNEIGH, 3), np.float32)
    shifts_np[:, -4:, :] = -1e11          # mark last 4 slots per config as padding
    shifts = jnp.array(shifts_np, DTYPE)
    return cart, ef, numatoms, species, atom_index, shifts


if __name__ == "__main__":
    key = jax.random.PRNGKey(0)
    kp, ki = jax.random.split(key)
    params = init_params(kp)
    cart, ef, numatoms, species, atom_index, shifts = make_inputs(ki)

    fwd = jax.jit(get_density_forward)
    density = fwd(cart, ef, numatoms, species, atom_index, shifts, params)
    density = jax.block_until_ready(density)

    ref = reference_density(cart, ef, numatoms, species, atom_index, shifts, params)
    # The density kernel now uses default MXU precision (bf16 operands, f32
    # accumulate) instead of Precision.HIGHEST, so allow ~1% deviation from the
    # pure-f32 reference.
    np.testing.assert_allclose(np.asarray(density), np.asarray(ref),
                               rtol=2e-2, atol=5e-3)
    print("KERNEL_OK")
</pallas_src>

<mosaic_0001>
module attributes {stable_mosaic.version = 11 : i64} {
  func.func @_pair_kernel(%arg0: i32, %arg1: memref<3x128xf32, #tpu.memory_space<vmem>>, %arg2: memref<3x128xf32, #tpu.memory_space<vmem>>, %arg3: memref<3x128xf32, #tpu.memory_space<vmem>>, %arg4: memref<8x128xf32, #tpu.memory_space<vmem>>, %arg5: memref<8x128xf32, #tpu.memory_space<vmem>>, %arg6: memref<8x128xf32, #tpu.memory_space<vmem>>, %arg7: memref<4x8x128xf32, #tpu.memory_space<vmem>>) attributes {dimension_semantics = [#tpu.dimension_semantics<parallel>], iteration_bounds = array<i64: 1>, scalar_prefetch = 0 : i64, scratch_operands = 0 : i64, tpu.core_type = #tpu.core_type<tc>, window_params = [{transform_indices = @transform_0, window_bounds = array<i64: 3, 128>}, {transform_indices = @transform_1, window_bounds = array<i64: 3, 128>}, {transform_indices = @transform_2, window_bounds = array<i64: 3, 128>}, {transform_indices = @transform_3, window_bounds = array<i64: 8, 128>}, {transform_indices = @transform_4, window_bounds = array<i64: 8, 128>}, {transform_indices = @transform_5, window_bounds = array<i64: 8, 128>}, {transform_indices = @transform_6, window_bounds = array<i64: 4, 8, 128>}]} {
    %c0 = arith.constant 0 : index
    %c0_0 = arith.constant 0 : index
    %0 = vector.load %arg2[%c0, %c0_0] : memref<3x128xf32, #tpu.memory_space<vmem>>, vector<3x128xf32>
    %c0_1 = arith.constant 0 : index
    %c0_2 = arith.constant 0 : index
    %1 = vector.load %arg1[%c0_1, %c0_2] : memref<3x128xf32, #tpu.memory_space<vmem>>, vector<3x128xf32>
    %2 = arith.subf %0, %1 : vector<3x128xf32>
    %c0_3 = arith.constant 0 : index
    %c0_4 = arith.constant 0 : index
    %3 = vector.load %arg3[%c0_3, %c0_4] : memref<3x128xf32, #tpu.memory_space<vmem>>, vector<3x128xf32>
    %4 = arith.addf %2, %3 : vector<3x128xf32>
    %5 = vector.extract_strided_slice %4 {offsets = [0, 0], sizes = [1, 128], strides = [1, 1]} : vector<3x128xf32> to vector<1x128xf32>
    %6 = vector.extract_strided_slice %4 {offsets = [1, 0], sizes = [1, 128], strides = [1, 1]} : vector<3x128xf32> to vector<1x128xf32>
    %7 = vector.extract_strided_slice %4 {offsets = [2, 0], sizes = [1, 128], strides = [1, 1]} : vector<3x128xf32> to vector<1x128xf32>
    %8 = arith.mulf %5, %5 : vector<1x128xf32>
    %9 = arith.mulf %6, %6 : vector<1x128xf32>
    %10 = arith.addf %8, %9 : vector<1x128xf32>
    %11 = arith.mulf %7, %7 : vector<1x128xf32>
    %12 = arith.addf %10, %11 : vector<1x128xf32>
    %cst = arith.constant 9.99999996E-13 : f32
    %13 = vector.broadcast %cst : f32 to vector<1x128xf32>
    %14 = arith.maximumf %12, %13 : vector<1x128xf32>
    %15 = math.rsqrt %14 : vector<1x128xf32>
    %16 = arith.mulf %14, %15 : vector<1x128xf32>
    %17 = arith.mulf %5, %15 : vector<1x128xf32>
    %18 = arith.mulf %6, %15 : vector<1x128xf32>
    %19 = arith.mulf %7, %15 : vector<1x128xf32>
    %cst_5 = arith.constant 0.628318548 : f32
    %20 = vector.broadcast %cst_5 : f32 to vector<1x128xf32>
    %21 = arith.mulf %16, %20 : vector<1x128xf32>
    %22 = math.cos %21 : vector<1x128xf32>
    %cst_6 = arith.constant 5.000000e-01 : f32
    %23 = vector.broadcast %cst_6 : f32 to vector<1x128xf32>
    %24 = arith.mulf %23, %22 : vector<1x128xf32>
    %cst_7 = arith.constant 5.000000e-01 : f32
    %25 = vector.broadcast %cst_7 : f32 to vector<1x128xf32>
    %26 = arith.addf %24, %25 : vector<1x128xf32>
    %27 = arith.mulf %26, %26 : vector<1x128xf32>
    %c0_8 = arith.constant 0 : index
    %c0_9 = arith.constant 0 : index
    %28 = vector.load %arg5[%c0_8, %c0_9] : memref<8x128xf32, #tpu.memory_space<vmem>>, vector<8x128xf32>
    %c0_10 = arith.constant 0 : index
    %c0_11 = arith.constant 0 : index
    %29 = vector.load %arg4[%c0_10, %c0_11] : memref<8x128xf32, #tpu.memory_space<vmem>>, vector<8x128xf32>
    %30 = vector.broadcast %16 : vector<1x128xf32> to vector<8x128xf32>
    %31 = arith.subf %30, %29 : vector<8x128xf32>
    %32 = arith.mulf %31, %31 : vector<8x128xf32>
    %33 = arith.mulf %28, %32 : vector<8x128xf32>
    %34 = math.exp %33 : vector<8x128xf32>
    %c0_12 = arith.constant 0 : index
    %c0_13 = arith.constant 0 : index
    %35 = vector.load %arg6[%c0_12, %c0_13] : memref<8x128xf32, #tpu.memory_space<vmem>>, vector<8x128xf32>
    %36 = arith.mulf %34, %35 : vector<8x128xf32>
    %37 = arith.mulf %27, %17 : vector<1x128xf32>
    %38 = arith.mulf %27, %18 : vector<1x128xf32>
    %39 = arith.mulf %27, %19 : vector<1x128xf32>
    %40 = vector.broadcast %27 : vector<1x128xf32> to vector<8x128xf32>
    %41 = arith.mulf %40, %36 : vector<8x128xf32>
    %c0_14 = arith.constant 0 : index
    %c0_15 = arith.constant 0 : index
    %c0_16 = arith.constant 0 : index
    %42 = vector.load %arg7[%c0_14, %c0_15, %c0_16] : memref<4x8x128xf32, #tpu.memory_space<vmem>>, vector<1x8x128xf32>
    %43 = vector.shape_cast %42 : vector<1x8x128xf32> to vector<8x128xf32>
    %44 = vector.shape_cast %41 : vector<8x128xf32> to vector<1x8x128xf32>
    tpu.vector_store %arg7[%c0_14, %c0_15, %c0_16], %44 {strides = array<i32>} : memref<4x8x128xf32, #tpu.memory_space<vmem>>, vector<1x8x128xf32>,
    %45 = vector.broadcast %37 : vector<1x128xf32> to vector<8x128xf32>
    %46 = arith.mulf %45, %36 : vector<8x128xf32>
    %c1 = arith.constant 1 : index
    %c0_17 = arith.constant 0 : index
    %c0_18 = arith.constant 0 : index
    %47 = vector.load %arg7[%c1, %c0_17, %c0_18] : memref<4x8x128xf32, #tpu.memory_space<vmem>>, vector<1x8x128xf32>
    %48 = vector.shape_cast %47 : vector<1x8x128xf32> to vector<8x128xf32>
    %49 = vector.shape_cast %46 : vector<8x128xf32> to vector<1x8x128xf32>
    tpu.vector_store %arg7[%c1, %c0_17, %c0_18], %49 {strides = array<i32>} : memref<4x8x128xf32, #tpu.memory_space<vmem>>, vector<1x8x128xf32>,
    %50 = vector.broadcast %38 : vector<1x128xf32> to vector<8x128xf32>
    %51 = arith.mulf %50, %36 : vector<8x128xf32>
    %c2 = arith.constant 2 : index
    %c0_19 = arith.constant 0 : index
    %c0_20 = arith.constant 0 : index
    %52 = vector.load %arg7[%c2, %c0_19, %c0_20] : memref<4x8x128xf32, #tpu.memory_space<vmem>>, vector<1x8x128xf32>
    %53 = vector.shape_cast %52 : vector<1x8x128xf32> to vector<8x128xf32>
    %54 = vector.shape_cast %51 : vector<8x128xf32> to vector<1x8x128xf32>
    tpu.vector_store %arg7[%c2, %c0_19, %c0_20], %54 {strides = array<i32>} : memref<4x8x128xf32, #tpu.memory_space<vmem>>, vector<1x8x128xf32>,
    %55 = vector.broadcast %39 : vector<1x128xf32> to vector<8x128xf32>
    %56 = arith.mulf %55, %36 : vector<8x128xf32>
    %c3 = arith.constant 3 : index
    %c0_21 = arith.constant 0 : index
    %c0_22 = arith.constant 0 : index
    %57 = vector.load %arg7[%c3, %c0_21, %c0_22] : memref<4x8x128xf32, #tpu.memory_space<vmem>>, vector<1x8x128xf32>
    %58 = vector.shape_cast %57 : vector<1x8x128xf32> to vector<8x128xf32>
    %59 = vector.shape_cast %56 : vector<8x128xf32> to vector<1x8x128xf32>
    tpu.vector_store %arg7[%c3, %c0_21, %c0_22], %59 {strides = array<i32>} : memref<4x8x128xf32, #tpu.memory_space<vmem>>, vector<1x8x128xf32>,
    return
  }
  func.func @transform_0(%arg0: i32) -> (i32, i32) {
    %c0_i32 = arith.constant 0 : i32
    %c0_i32_0 = arith.constant 0 : i32
    return %c0_i32, %arg0 : i32, i32
  }
  func.func @transform_1(%arg0: i32) -> (i32, i32) {
    %c0_i32 = arith.constant 0 : i32
    %c0_i32_0 = arith.constant 0 : i32
    return %c0_i32, %arg0 : i32, i32
  }
  func.func @transform_2(%arg0: i32) -> (i32, i32) {
    %c0_i32 = arith.constant 0 : i32
    %c0_i32_0 = arith.constant 0 : i32
    return %c0_i32, %arg0 : i32, i32
  }
  func.func @transform_3(%arg0: i32) -> (i32, i32) {
    %c0_i32 = arith.constant 0 : i32
    %c0_i32_0 = arith.constant 0 : i32
    return %c0_i32, %arg0 : i32, i32
  }
  func.func @transform_4(%arg0: i32) -> (i32, i32) {
    %c0_i32 = arith.constant 0 : i32
    %c0_i32_0 = arith.constant 0 : i32
    return %c0_i32, %arg0 : i32, i32
  }
  func.func @transform_5(%arg0: i32) -> (i32, i32) {
    %c0_i32 = arith.constant 0 : i32
    %c0_i32_0 = arith.constant 0 : i32
    return %c0_i32, %arg0 : i32, i32
  }
  func.func @transform_6(%arg0: i32) -> (i32, i32, i32) {
    %c0_i32 = arith.constant 0 : i32
    %c0_i32_0 = arith.constant 0 : i32
    %c0_i32_1 = arith.constant 0 : i32
    return %c0_i32, %c0_i32_0, %arg0 : i32, i32, i32
  }
}

module attributes {stable_mosaic.version = 11 : i64} {
  func.func @_density_kernel(%arg0: i32, %arg1: memref<4x16x8xf32, #tpu.memory_space<vmem>>, %arg2: memref<2x8x32xf32, #tpu.memory_space<vmem>>, %arg3: memref<16x32xf32, #tpu.memory_space<vmem>>) attributes {dimension_semantics = [#tpu.dimension_semantics<parallel>], iteration_bounds = array<i64: 1>, scalar_prefetch = 0 : i64, scratch_operands = 0 : i64, tpu.core_type = #tpu.core_type<tc>, window_params = [{transform_indices = @transform_0, window_bounds = array<i64: 4, 16, 8>}, {pipeline_mode = #tpu.pipeline_mode<synchronous>, transform_indices = @transform_1, window_bounds = array<i64: 2, 8, 32>}, {transform_indices = @transform_2, window_bounds = array<i64: 16, 32>}]} {
    %cst = arith.constant 0.000000e+00 : f32
    %0 = vector.broadcast %cst : f32 to vector<16x32xf32>
    %c0 = arith.constant 0 : index
    %c0_0 = arith.constant 0 : index
    %c0_1 = arith.constant 0 : index
    %1 = vector.load %arg1[%c0, %c0_0, %c0_1] : memref<4x16x8xf32, #tpu.memory_space<vmem>>, vector<1x16x8xf32>
    %2 = vector.shape_cast %1 : vector<1x16x8xf32> to vector<16x8xf32>
    %c0_2 = arith.constant 0 : index
    %c0_3 = arith.constant 0 : index
    %c0_4 = arith.constant 0 : index
    %3 = vector.load %arg2[%c0_2, %c0_3, %c0_4] : memref<2x8x32xf32, #tpu.memory_space<vmem>>, vector<1x8x32xf32>
    %4 = vector.shape_cast %3 : vector<1x8x32xf32> to vector<8x32xf32>
    %cst_5 = arith.constant dense<0.000000e+00> : vector<16x32xf32>
    %5 = tpu.matmul %2, %4, %cst_5 {dimension_numbers = #tpu.dot_dimension_numbers<[1], [0], [0], [1], [0, 0, 1, 1], [], []>} : vector<16x8xf32>, vector<8x32xf32>, vector<16x32xf32> -> vector<16x32xf32>
    %6 = vector.shape_cast %5 : vector<16x32xf32> to vector<1x16x32xf32>
    %7 = arith.mulf %6, %6 : vector<1x16x32xf32>
    %cst_6 = arith.constant dense<0.000000e+00> : vector<16x32xf32>
    %8 = vector.multi_reduction <add>, %7, %cst_6 [0] : vector<1x16x32xf32> to vector<16x32xf32>
    %9 = arith.addf %0, %8 : vector<16x32xf32>
    %c1 = arith.constant 1 : index
    %c0_7 = arith.constant 0 : index
    %c0_8 = arith.constant 0 : index
    %10 = vector.load %arg1[%c1, %c0_7, %c0_8] : memref<4x16x8xf32, #tpu.memory_space<vmem>>, vector<3x16x8xf32>
    %11 = vector.shape_cast %10 : vector<3x16x8xf32> to vector<48x8xf32>
    %c1_9 = arith.constant 1 : index
    %c0_10 = arith.constant 0 : index
    %c0_11 = arith.constant 0 : index
    %12 = vector.load %arg2[%c1_9, %c0_10, %c0_11] : memref<2x8x32xf32, #tpu.memory_space<vmem>>, vector<1x8x32xf32>
    %13 = vector.shape_cast %12 : vector<1x8x32xf32> to vector<8x32xf32>
    %cst_12 = arith.constant dense<0.000000e+00> : vector<48x32xf32>
    %14 = tpu.matmul %11, %13, %cst_12 {dimension_numbers = #tpu.dot_dimension_numbers<[1], [0], [0], [1], [0, 0, 1, 1], [], []>} : vector<48x8xf32>, vector<8x32xf32>, vector<48x32xf32> -> vector<48x32xf32>
    %15 = vector.shape_cast %14 : vector<48x32xf32> to vector<3x16x32xf32>
    %16 = arith.mulf %15, %15 : vector<3x16x32xf32>
    %cst_13 = arith.constant dense<0.000000e+00> : vector<16x32xf32>
    %17 = vector.multi_reduction <add>, %16, %cst_13 [0] : vector<3x16x32xf32> to vector<16x32xf32>
    %18 = arith.addf %9, %17 : vector<16x32xf32>
    %c0_14 = arith.constant 0 : index
    %c0_15 = arith.constant 0 : index
    %19 = vector.load %arg3[%c0_14, %c0_15] : memref<16x32xf32, #tpu.memory_space<vmem>>, vector<16x32xf32>
    tpu.vector_store %arg3[%c0_14, %c0_15], %18 {strides = array<i32>} : memref<16x32xf32, #tpu.memory_space<vmem>>, vector<16x32xf32>,
    return
  }
  func.func @transform_0(%arg0: i32) -> (i32, i32, i32) {
    %c0_i32 = arith.constant 0 : i32
    %c0_i32_0 = arith.constant 0 : i32
    %c0_i32_1 = arith.constant 0 : i32
    return %c0_i32, %arg0, %c0_i32_0 : i32, i32, i32
  }
  func.func @transform_1(%arg0: i32) -> (i32, i32, i32) {
    %c0_i32 = arith.constant 0 : i32
    %c0_i32_0 = arith.constant 0 : i32
    %c0_i32_1 = arith.constant 0 : i32
    %c0_i32_2 = arith.constant 0 : i32
    return %c0_i32, %c0_i32_0, %c0_i32_1 : i32, i32, i32
  }
  func.func @transform_2(%arg0: i32) -> (i32, i32) {
    %c0_i32 = arith.constant 0 : i32
    %c0_i32_0 = arith.constant 0 : i32
    return %arg0, %c0_i32 : i32, i32
  }
}

</mosaic_0001>

<llo_original>
// kernel: get_density_forward.2
$region0: #{get_density_forward.2}
  #allocation0 [shape = 'u32[]', space=smem, size = 0x4, offset = 0x4, fixed_abs, tag = 'smem constant byte address 0x4 - core index']
  #allocation1 [shape = 'u32[144,128]{1,0:T(1,128)}', space=vmem, size = 0x12000, scoped, tag = 'internal scratch']
  %s0 = inlined_call_operand.vmem [shape: f32[3,128], index: 0, kind: input, shape index: {}]
  %s1 = inlined_call_operand.vmem [shape: f32[3,128], index: 1, kind: input, shape index: {}]
  %s2 = inlined_call_operand.vmem [shape: f32[3,128], index: 2, kind: input, shape index: {}]
  %s3 = inlined_call_operand.vmem [shape: f32[8,128], index: 3, kind: input, shape index: {}]
  %s4 = inlined_call_operand.vmem [shape: f32[8,128], index: 4, kind: input, shape index: {}]
  %s5 = inlined_call_operand.vmem [shape: f32[8,128], index: 5, kind: input, shape index: {}]
  %s6 = inlined_call_operand.vmem [shape: f32[4,8,128], index: 6, kind: output, shape index: {}]
  %s7 = sld [smem:[#allocation0]]
  $region34: #{get_density_forward.2} parent=0
    _
  %s9 = ssub.s32 1, %s7
  %s10 = scalar_select 0, %s9, %s7
  // Predicated region
  $region2: #{get_density_forward.2} parent=0 // pred_check
    _
  $region3: #{get_density_forward.2} parent=0 // pred_check_branch
    %12 = sbr.rel (0) target = $region5
  $region4: #{get_density_forward.2} parent=0 // pred_region
    _
  $region5: #{get_density_forward.2} parent=0 // pred_fallthru
    _
  // Predicated region
  $region6: #{get_density_forward.2} parent=0 // pred_check
    _
  $region7: #{get_density_forward.2} parent=0 // pred_check_branch
    %14 = sbr.rel (0) target = $region9
  $region8: #{get_density_forward.2} parent=0 // pred_region
    _
  $region9: #{get_density_forward.2} parent=0 // pred_fallthru
    _
  // Predicated region
  $region10: #{get_density_forward.2} parent=0 // pred_check
    _
  $region11: #{get_density_forward.2} parent=0 // pred_check_branch
    %16 = sbr.rel (0) target = $region13
  $region12: #{get_density_forward.2} parent=0 // pred_region
    _
  $region13: #{get_density_forward.2} parent=0 // pred_fallthru
    _
  // Predicated region
  $region14: #{get_density_forward.2} parent=0 // pred_check
    _
  $region15: #{get_density_forward.2} parent=0 // pred_check_branch
    %18 = sbr.rel (0) target = $region17
  $region16: #{get_density_forward.2} parent=0 // pred_region
    _
  $region17: #{get_density_forward.2} parent=0 // pred_fallthru
    _
  // Predicated region
  $region18: #{get_density_forward.2} parent=0 // pred_check
    _
  $region19: #{get_density_forward.2} parent=0 // pred_check_branch
    %20 = sbr.rel (0) target = $region21
  $region20: #{get_density_forward.2} parent=0 // pred_region
    _
  $region21: #{get_density_forward.2} parent=0 // pred_fallthru
    _
  // Predicated region
  $region22: #{get_density_forward.2} parent=0 // pred_check
    _
  $region23: #{get_density_forward.2} parent=0 // pred_check_branch
    %22 = sbr.rel (0) target = $region25
  $region24: #{get_density_forward.2} parent=0 // pred_region
    _
  $region25: #{get_density_forward.2} parent=0 // pred_fallthru
    _
  %v23 = vld [vmem:[%s1] sm:$0x7]
  %v24 = vld [vmem:[%s0] sm:$0x7]
  %v25 = vsub.f32 %v23, %v24
  %v26 = vld [vmem:[%s2] sm:$0x7]
  %v27 = vadd.f32 %v25, %v26
  %v28 = vmul.f32 %v27, %v27
  %v30 = vrot.slane %v28, 1
  %v32 = vadd.f32 %v28, %v30
  %v33 = vrot.slane %v28, 2
  %v35 = vadd.f32 %v32, %v33
  %v36 = vmax.f32 %v35, 1e-12
  %v37 = vrsqrt.pop %v36
  %v38 = vmul.f32 %v36, %v37
  %v39 = vmul.f32 %v27, %v37
  %v41 = vrot.slane %v37, 7
  %v43 = vmul.f32 %v27, %v41
  %v44 = vrot.slane %v37, 6
  %v46 = vmul.f32 %v27, %v44
  %v47 = vmul.f32 %v38, 0.62831855
  %v48 = vand.u32 2147483647, %v47
  %vm49 = vcmp.le.f32.partialorder %v48, 0.7853982
  %vm50 = vcmp.lt.s32.totalorder %v47, 0
  %v51 = vand.u32 %v47, 2139095040
  %v52 = vshrl.u32 %v51, 23
  %v53 = vsub.s32 %v52, 127
  %v54 = vand.u32 2147483647, %v47
  %v55 = vand.u32 %v54, 8388607
  %v56 = vor.u32 %v55, 8388608
  %v57 = vsub.s32 0, %v56
  %v58 = vadd.s32 %v53, 1
  %vm59 = vcmp.gt.s32.totalorder %v58, 0
  %v60 = vsel %vm59, %v58, 0
  %v61 = vshrl.u32 %v60, 5
  %v62 = vand.u32 %v60, 31
  %v63 = vsub.s32 32, %v62
  %v64 = vshrl.u32 683565275, %v63
  %v65 = vshll.u32 683565275, %v62
  %v66 = vshrl.u32 2475754826, %v63
  %v67 = vor.u32 %v65, %v66
  %v68 = vshll.u32 2475754826, %v62
  %v69 = vshrl.u32 2131351028, %v63
  %v70 = vor.u32 %v68, %v69
  %v71 = vshll.u32 2131351028, %v62
  %v72 = vshrl.u32 2102212464, %v63
  %v73 = vor.u32 %v71, %v72
  %v74 = vshll.u32 2102212464, %v62
  %v75 = vshrl.u32 920167782, %v63
  %v76 = vor.u32 %v74, %v75
  %v77 = vshll.u32 920167782, %v62
  %v78 = vshrl.u32 1326507024, %v63
  %v79 = vor.u32 %v77, %v78
  %vm80 = vcmp.lt.s32.totalorder %v61, 1
  %vm81 = vcmp.lt.s32.totalorder %v61, 2
  %vm82 = vcmp.lt.s32.totalorder %v61, 3
  %vm83 = vcmp.lt.s32.totalorder %v61, 4
  %v84 = vsel %vm80, %v64, %v67
  %v85 = vsel %vm83, %v73, 2102212464
  %v86 = vsel %vm82, %v70, %v85
  %v87 = vsel %vm81, %v84, %v86
  %v88 = vsel %vm80, %v67, %v70
  %v89 = vsel %vm83, %v76, 920167782
  %v90 = vsel %vm82, %v73, %v89
  %v91 = vsel %vm81, %v88, %v90
  %v92 = vsel %vm80, %v70, %v73
  %v93 = vsel %vm83, %v79, 1326507024
  %v94 = vsel %vm82, %v76, %v93
  %v95 = vsel %vm81, %v92, %v94
  %v96 = vshll.u32 %v56, 8
  %v97 = vmul.u32.u64.compose %v96, %v95
  %v98 = vextract.low.u32 %v97
  %v99 = vextract.high.u32 %v97
  %v100 = vmul.u32.u64.compose %v96, %v91
  %v101 = vextract.low.u32 %v100
  %v102 = vextract.high.u32 %v100
  %v103 = vmul.u32 %v96, %v87
  %v104 = vadd.s32 %v99, %v101
  %vm105 = vc.u32 %v99, %v101
  %v106 = vadd.s32 %v102, 1
  %v107 = vsel %vm105, %v106, %v102
  %v108 = vadd.s32 %v103, %v107
  %v109 = vadd.s32 %v108, 536870912
  %v110 = vshrl.u32 %v109, 30
  %v111 = vshll.u32 %v110, 30
  %v112 = vsub.s32 %v108, %v111
  %vm113 = vcmp.lt.s32.totalorder %v112, 0
  %v114 = vsub.s32 0, %v112
  %v115 = vsel %vm113, %v114, %v112
  %v116 = vclz %v115
  %v117 = vsub.s32 %v116, 2
  %vm118 = vcmp.gt.s32.totalorder 0, %v117
  %v119 = vsel %vm118, 0, %v117
  %v120 = vsub.s32 32, %v119
  %v121 = vshll.u32 %v112, %v119
  %v122 = vshrl.u32 %v104, %v120
  %v123 = vor.u32 %v121, %v122
  %v124 = vsub.s32 4294967266, %v119
  %v125 = vadd.s32 %v124, 127
  %v126 = vshll.u32 %v125, 23
  %v127 = vor.u32 4788187, %v126
  %v128 = vand.u32 2147483647, %v127
  %v130 = vcvt.s32.f32 %v123
  %v131 = vmul.f32 %v130, %v128
  %v132 = vxor.u32 %v131, 2147483648
  %v133 = vsel %vm50, %v132, %v131
  %v134 = vsub.s32 4, %v110
  %v135 = vsel %vm50, %v134, %v110
  %v136 = vsel %vm49, %v47, %v133
  %v137 = vsel %vm49, 0, %v135
  %v138 = vcosq.f32.pop %v136
  %v139 = vsinq.f32.pop %v136
  %vm140 = vweird.f32 %v47
  %v141 = vand.u32 %v137, 3
  %vm142 = vcmp.lt.s32.totalorder %v141, 2
  %vm143 = vcmp.eq.s32.totalorder %v141, 0
  %v144 = vxor.u32 %v139, 2147483648
  %v145 = vsel %vm143, %v138, %v144
  %vm146 = vcmp.eq.s32.totalorder %v141, 2
  %v147 = vxor.u32 %v138, 2147483648
  %v148 = vsel %vm146, %v147, %v139
  %v149 = vsel %vm142, %v145, %v148
  %v150 = vsel %vm140, nan, %v149
  %v151 = vmul.f32 %v150, 0.5
  %v152 = vadd.f32 %v151, 0.5
  %v153 = vmul.f32 %v152, %v152
  %v154 = vld [vmem:[%s4] sm:$0xff]
  %v155 = vld [vmem:[%s3] sm:$0xff]
  %v156 = vlaneseq
  %v157 = vshrl.u32 %v156, 7
  %v158 = vsub.s32 0, %v157
  %v159 = vrot.slane %v38, %v158
  %v160 = vsub.f32 %v159, %v155
  %v161 = vmul.f32 %v160, %v160
  %v162 = vmul.f32 %v154, %v161
  %v163 = vmul.f32 %v162, 1.442695
  %v164 = vpow.pop %v163
  %v165 = vld [vmem:[%s5] sm:$0xff]
  %v166 = vmul.f32 %v164, %v165
  %v167 = vmul.f32 %v153, %v39
  %v169 = vrot.slane %v43, 1
  %v171 = vmul.f32 %v153, %v169
  %v173 = vrot.slane %v46, 2
  %v175 = vmul.f32 %v153, %v173
  %v176 = vlaneseq
  %v177 = vshrl.u32 %v176, 7
  %v178 = vsub.s32 0, %v177
  %v179 = vrot.slane %v153, %v178
  %v180 = vmul.f32 %v179, %v166
  %181 = vst [vmem:[%s6] sm:$0xff] %v180
  %v182 = vlaneseq
  %v183 = vshrl.u32 %v182, 7
  %v184 = vsub.s32 0, %v183
  %v185 = vrot.slane %v167, %v184
  %v186 = vmul.f32 %v185, %v166
  %s187 = scalar_lea.vmem %s6, 8
  %188 = vst [vmem:[%s187] sm:$0xff] %v186
  %v189 = vlaneseq
  %v190 = vshrl.u32 %v189, 7
  %v191 = vsub.s32 0, %v190
  %v192 = vrot.slane %v171, %v191
  %v193 = vmul.f32 %v192, %v166
  %s194 = scalar_lea.vmem %s6, 16
  %195 = vst [vmem:[%s194] sm:$0xff] %v193
  %v196 = vlaneseq
  %v197 = vshrl.u32 %v196, 7
  %v198 = vsub.s32 0, %v197
  %v199 = vrot.slane %v175, %v198
  %v200 = vmul.f32 %v199, %v166
  %s201 = scalar_lea.vmem %s6, 24
  %202 = vst [vmem:[%s201] sm:$0xff] %v200
  // Predicated region
  $region26: #{get_density_forward.2} parent=0 // pred_check
    _
  $region27: #{get_density_forward.2} parent=0 // pred_check_branch
    %204 = sbr.rel (0) target = $region29
  $region28: #{get_density_forward.2} parent=0 // pred_region
    _
  $region29: #{get_density_forward.2} parent=0 // pred_fallthru
    _
  // Predicated region
  $region30: #{get_density_forward.2} parent=0 // pred_check
    _
  $region31: #{get_density_forward.2} parent=0 // pred_check_branch
    %206 = sbr.rel (0) target = $region33
  $region32: #{get_density_forward.2} parent=0 // pred_region
    _
  $region33: #{get_density_forward.2} parent=0 // pred_fallthru
    _

// kernel: get_density_forward.3
$region0: #{get_density_forward.3}
  #allocation0 [shape = 'u32[]', space=smem, size = 0x4, offset = 0x4, fixed_abs, tag = 'smem constant byte address 0x4 - core index']
  #allocation1 [shape = 'u32[144,128]{1,0:T(1,128)}', space=vmem, size = 0x12000, scoped, tag = 'internal scratch']
  %s0 = inlined_call_operand.vmem [shape: f32[4,16,8], index: 0, kind: input, shape index: {}]
  %s1 = inlined_call_operand.vmem [shape: f32[2,8,32], index: 1, kind: input, shape index: {}]
  %s2 = inlined_call_operand.hbm [shape: f32[16,32], index: 2, kind: output, shape index: {}]
  %s3 = sld [smem:[#allocation0]]
  $region18: #{get_density_forward.3} parent=0
    _
  %s5 = ssub.s32 1, %s3
  %s6 = scalar_select 0, %s5, %s3
  $region1: #{get_density_forward.3} parent=0
    #allocation2 [shape = 'u8[8192]{0}', space=vmem, size = 0x2000, scoped, tag = 'output window, operand 0, single buffered']
    #allocation3 [shape = 's32[1]{0}', space=sflag, size = 0x4, scoped, tag = 'scoped memory for get_density_forward.3']
    %7 = vsyncpa [#allocation3], 0
    // Predicated region
    $region2: #{get_density_forward.3} parent=1 // pred_check
      _
    $region3: #{get_density_forward.3} parent=1 // pred_check_branch
      %9 = sbr.rel (0) target = $region5
    $region4: #{get_density_forward.3} parent=1 // pred_region
      _
    $region5: #{get_density_forward.3} parent=1 // pred_fallthru
      _
    // Predicated region
    $region6: #{get_density_forward.3} parent=1 // pred_check
      _
    $region7: #{get_density_forward.3} parent=1 // pred_check_branch
      %11 = sbr.rel (0) target = $region9
    $region8: #{get_density_forward.3} parent=1 // pred_region
      _
    $region9: #{get_density_forward.3} parent=1 // pred_fallthru
      _
    %v12 = vld [vmem:[%s0] sm:$0xff]
    %v13 = vld [vmem:[%s0 + $0x8] sm:$0xff]
    %v14 = vld [vmem:[%s1] sm:$0xff]
    %vm15 = vcmask 64512
    %v17 = vsel %vm15, %v12, 0
    %v20 = vsel %vm15, %v13, 0
    %22 = vmatprep.subr.mxu0 0.0
    %23 = vmatpush1.msra.mxu0 %v14
    %24 = vmatprep.subr.mxu0 0.0
    %25 = vmatpush1.msra.mxu0 0.0
    %26 = vmatprep.subr.mxu0 0.0
    %27 = vmatpush1.msra.mxu0 0.0
    %28 = vmatprep.subr.mxu0 0.0
    %29 = vmatpush1.msra.mxu0 0.0
    %30 = vmatprep.subr.mxu0 0.0
    %31 = vmatpush1.msra.mxu0 0.0
    %32 = vmatprep.subr.mxu0 0.0
    %33 = vmatpush1.msra.mxu0 0.0
    %34 = vmatprep.subr.mxu0 0.0
    %35 = vmatpush1.msra.mxu0 0.0
    %36 = vmatprep.subr.mxu0 0.0
    %37 = vmatpush1.msra.mxu0 0.0
    %38 = vmatprep.subr.mxu0 0.0
    %39 = vmatpush1.msra.mxu0 0.0
    %40 = vmatprep.subr.mxu0 0.0
    %41 = vmatpush1.msra.mxu0 0.0
    %42 = vmatprep.subr.mxu0 0.0
    %43 = vmatpush1.msra.mxu0 0.0
    %44 = vmatprep.subr.mxu0 0.0
    %45 = vmatpush1.msra.mxu0 0.0
    %46 = vmatprep.subr.mxu0 0.0
    %47 = vmatpush1.msra.mxu0 0.0
    %48 = vmatprep.subr.mxu0 0.0
    %49 = vmatpush1.msra.mxu0 0.0
    %50 = vmatprep.subr.mxu0 0.0
    %51 = vmatpush1.msra.mxu0 0.0
    %52 = vmatprep.subr.mxu0 0.0
    %53 = vmatpush1.msra.mxu0 0.0
    %54 = vmatprep.subr.mxu0 0.0
    %55 = vmatpush1.msra.mxu0 0.0
    %56 = vmatprep.subr.mxu0 0.0
    %57 = vmatpush1.msra.mxu0 0.0
    %58 = vmatprep.subr.mxu0 0.0
    %59 = vmatpush1.msra.mxu0 0.0
    %60 = vmatprep.subr.mxu0 0.0
    %61 = vmatpush1.msra.mxu0 0.0
    %62 = vmatprep.subr.mxu0 0.0
    %63 = vmatpush1.msra.mxu0 0.0
    %64 = vmatprep.subr.mxu0 0.0
    %65 = vmatpush1.msra.mxu0 0.0
    %66 = vmatprep.subr.mxu0 0.0
    %67 = vmatpush1.msra.mxu0 0.0
    %68 = vmatprep.subr.mxu0 0.0
    %69 = vmatpush1.msra.mxu0 0.0
    %70 = vmatprep.subr.mxu0 0.0
    %71 = vmatpush1.msra.mxu0 0.0
    %72 = vmatprep.subr.mxu0 0.0
    %73 = vmatpush1.msra.mxu0 0.0
    %74 = vmatprep.subr.mxu0 0.0
    %75 = vmatpush1.msra.mxu0 0.0
    %76 = vmatprep.subr.mxu0 0.0
    %77 = vmatpush1.msra.mxu0 0.0
    %78 = vmatprep.subr.mxu0 0.0
    %79 = vmatpush1.msra.mxu0 0.0
    %80 = vmatprep.subr.mxu0 0.0
    %81 = vmatpush1.msra.mxu0 0.0
    %82 = vmatprep.subr.mxu0 0.0
    %83 = vmatpush1.msra.mxu0 0.0
    %84 = vmatprep.subr.mxu0 0.0
    %85 = vmatpush1.msra.mxu0 0.0
    %86 = vmatprep.mubr.f32.mxu0 0.0
    %87 = vmatmul.mubr.f32.gmra.mrb[0].mxu0 %v17
    %v88 = vpop.f32.mrb[0].mxu0
    %v89 = vadd.f32 0.0, %v88
    %v90 = vpop.f32.mrb[0].mxu0
    %91 = vmatprep.mubr.f32.mxu0 0.0
    %92 = vmatmul.mubr.f32.gmra.mrb[0].mxu0 %v20
    %v93 = vpop.f32.mrb[0].mxu0
    %v94 = vadd.f32 0.0, %v93
    %v95 = vpop.f32.mrb[0].mxu0
    %96 = vdwg.mxu0
    %v97 = vmul.f32 %v89, %v89
    %v98 = vmul.f32 %v94, %v94
    %v99 = vadd.f32 %v97, 0.0
    %v100 = vadd.f32 %v98, 0.0
    %v101 = vadd.f32 %v99, 0.0
    %v102 = vadd.f32 %v100, 0.0
    %s103 = scalar_lea.vmem %s0, 16
    %v104 = vld [vmem:[%s103] sm:$0xff]
    %v105 = vld [vmem:[%s103 + $0x8] sm:$0xff]
    %v106 = vld [vmem:[%s103 + $0x10] sm:$0xff]
    %v107 = vld [vmem:[%s103 + $0x18] sm:$0xff]
    %v108 = vld [vmem:[%s103 + $0x20] sm:$0xff]
    %v109 = vld [vmem:[%s103 + $0x28] sm:$0xff]
    %s110 = scalar_lea.vmem %s1, 8
    %v111 = vld [vmem:[%s110] sm:$0xff]
    %v113 = vsel %vm15, %v104, 0
    %v116 = vsel %vm15, %v105, 0
    %v119 = vsel %vm15, %v106, 0
    %v122 = vsel %vm15, %v107, 0
    %v125 = vsel %vm15, %v108, 0
    %v128 = vsel %vm15, %v109, 0
    %130 = vmatprep.subr.mxu0 0.0
    %131 = vmatpush1.msra.mxu0 %v111
    %132 = vmatprep.subr.mxu0 0.0
    %133 = vmatpush1.msra.mxu0 0.0
    %134 = vmatprep.subr.mxu0 0.0
    %135 = vmatpush1.msra.mxu0 0.0
    %136 = vmatprep.subr.mxu0 0.0
    %137 = vmatpush1.msra.mxu0 0.0
    %138 = vmatprep.subr.mxu0 0.0
    %139 = vmatpush1.msra.mxu0 0.0
    %140 = vmatprep.subr.mxu0 0.0
    %141 = vmatpush1.msra.mxu0 0.0
    %142 = vmatprep.subr.mxu0 0.0
    %143 = vmatpush1.msra.mxu0 0.0
    %144 = vmatprep.subr.mxu0 0.0
    %145 = vmatpush1.msra.mxu0 0.0
    %146 = vmatprep.subr.mxu0 0.0
    %147 = vmatpush1.msra.mxu0 0.0
    %148 = vmatprep.subr.mxu0 0.0
    %149 = vmatpush1.msra.mxu0 0.0
    %150 = vmatprep.subr.mxu0 0.0
    %151 = vmatpush1.msra.mxu0 0.0
    %152 = vmatprep.subr.mxu0 0.0
    %153 = vmatpush1.msra.mxu0 0.0
    %154 = vmatprep.subr.mxu0 0.0
    %155 = vmatpush1.msra.mxu0 0.0
    %156 = vmatprep.subr.mxu0 0.0
    %157 = vmatpush1.msra.mxu0 0.0
    %158 = vmatprep.subr.mxu0 0.0
    %159 = vmatpush1.msra.mxu0 0.0
    %160 = vmatprep.subr.mxu0 0.0
    %161 = vmatpush1.msra.mxu0 0.0
    %162 = vmatprep.subr.mxu0 0.0
    %163 = vmatpush1.msra.mxu0 0.0
    %164 = vmatprep.subr.mxu0 0.0
    %165 = vmatpush1.msra.mxu0 0.0
    %166 = vmatprep.subr.mxu0 0.0
    %167 = vmatpush1.msra.mxu0 0.0
    %168 = vmatprep.subr.mxu0 0.0
    %169 = vmatpush1.msra.mxu0 0.0
    %170 = vmatprep.subr.mxu0 0.0
    %171 = vmatpush1.msra.mxu0 0.0
    %172 = vmatprep.subr.mxu0 0.0
    %173 = vmatpush1.msra.mxu0 0.0
    %174 = vmatprep.subr.mxu0 0.0
    %175 = vmatpush1.msra.mxu0 0.0
    %176 = vmatprep.subr.mxu0 0.0
    %177 = vmatpush1.msra.mxu0 0.0
    %178 = vmatprep.subr.mxu0 0.0
    %179 = vmatpush1.msra.mxu0 0.0
    %180 = vmatprep.subr.mxu0 0.0
    %181 = vmatpush1.msra.mxu0 0.0
    %182 = vmatprep.subr.mxu0 0.0
    %183 = vmatpush1.msra.mxu0 0.0
    %184 = vmatprep.subr.mxu0 0.0
    %185 = vmatpush1.msra.mxu0 0.0
    %186 = vmatprep.subr.mxu0 0.0
    %187 = vmatpush1.msra.mxu0 0.0
    %188 = vmatprep.subr.mxu0 0.0
    %189 = vmatpush1.msra.mxu0 0.0
    %190 = vmatprep.subr.mxu0 0.0
    %191 = vmatpush1.msra.mxu0 0.0
    %192 = vmatprep.subr.mxu0 0.0
    %193 = vmatpush1.msra.mxu0 0.0
    %194 = vmatprep.mubr.f32.mxu0 0.0
    %195 = vmatmul.mubr.f32.gmra.mrb[0].mxu0 %v113
    %v196 = vpop.f32.mrb[0].mxu0
    %v197 = vadd.f32 0.0, %v196
    %v198 = vpop.f32.mrb[0].mxu0
    %199 = vmatprep.mubr.f32.mxu0 0.0
    %200 = vmatmul.mubr.f32.gmra.mrb[0].mxu0 %v116
    %v201 = vpop.f32.mrb[0].mxu0
    %v202 = vadd.f32 0.0, %v201
    %v203 = vpop.f32.mrb[0].mxu0
    %204 = vmatprep.mubr.f32.mxu0 0.0
    %205 = vmatmul.mubr.f32.gmra.mrb[0].mxu0 %v119
    %v206 = vpop.f32.mrb[0].mxu0
    %v207 = vadd.f32 0.0, %v206
    %v208 = vpop.f32.mrb[0].mxu0
    %209 = vmatprep.mubr.f32.mxu0 0.0
    %210 = vmatmul.mubr.f32.gmra.mrb[0].mxu0 %v122
    %v211 = vpop.f32.mrb[0].mxu0
    %v212 = vadd.f32 0.0, %v211
    %v213 = vpop.f32.mrb[0].mxu0
    %214 = vmatprep.mubr.f32.mxu0 0.0
    %215 = vmatmul.mubr.f32.gmra.mrb[0].mxu0 %v125
    %v216 = vpop.f32.mrb[0].mxu0
    %v217 = vadd.f32 0.0, %v216
    %v218 = vpop.f32.mrb[0].mxu0
    %219 = vmatprep.mubr.f32.mxu0 0.0
    %220 = vmatmul.mubr.f32.gmra.mrb[0].mxu0 %v128
    %v221 = vpop.f32.mrb[0].mxu0
    %v222 = vadd.f32 0.0, %v221
    %v223 = vpop.f32.mrb[0].mxu0
    %224 = vdwg.mxu0
    %v225 = vmul.f32 %v197, %v197
    %v226 = vmul.f32 %v202, %v202
    %v227 = vmul.f32 %v207, %v207
    %v228 = vmul.f32 %v212, %v212
    %v229 = vmul.f32 %v217, %v217
    %v230 = vmul.f32 %v222, %v222
    %vm231 = vcmask 261120
    %v232 = vsel %vm231, %v225, 0.0
    %v233 = vsel %vm231, %v227, 0.0
    %v234 = vadd.f32 %v232, %v233
    %v235 = vsel %vm231, %v229, 0.0
    %v236 = vadd.f32 %v234, %v235
    %v237 = vsel %vm231, %v226, 0.0
    %v238 = vsel %vm231, %v228, 0.0
    %v239 = vadd.f32 %v237, %v238
    %v240 = vsel %vm231, %v230, 0.0
    %v241 = vadd.f32 %v239, %v240
    %v242 = vadd.f32 %v101, %v236
    %v243 = vadd.f32 %v102, %v241
    %244 = vst.msk [vmem:[#allocation2] sm:$0xff] %vm231, %v242
    %245 = vst.msk [vmem:[#allocation2 + $0x8] sm:$0xff] %vm231, %v243
    // Predicated region
    $region10: #{get_density_forward.3} parent=1 // pred_check
      _
    $region11: #{get_density_forward.3} parent=1 // pred_check_branch
      %247 = sbr.rel (0) target = $region13
    $region12: #{get_density_forward.3} parent=1 // pred_region
      %s249 = ssub.s32 256, 256
      %250 = vsyncadd [#allocation3], %s249
      %s251 = sshll.u32 [#allocation2], 4
      %s252 = int_to_ptr.vmem [resolvable:$true] %s251
      %257 = dma.vmem_to_hbm [thread:$0]  %s252, 256, %s2, [#allocation3], 128, 128, 8
    $region13: #{get_density_forward.3} parent=1 // pred_fallthru
      _
    // Predicated region
    $region14: #{get_density_forward.3} parent=1 // pred_check
      _
    $region15: #{get_density_forward.3} parent=1 // pred_check_branch
      %259 = sbr.rel (0) target = $region17
    $region16: #{get_density_forward.3} parent=1 // pred_region
      %260 = dma.done [#allocation3], 256
    $region17: #{get_density_forward.3} parent=1 // pred_fallthru
      _
    %261 = vsyncpa [#allocation3], 1

</llo_original>
